<compile_context>
chip_gen: v7x
topology: tpu7x:2x2x1
jax: 0.10.0
libtpu: 0.0.40
codegen_flags: <defaults>
</compile_context>

<pallas_src>
import functools

import jax
import jax.numpy as jnp
import numpy as np
from jax.experimental import pallas as pl
from jax.experimental.pallas import tpu as pltpu

_LANE = 128
_SUBLANE = 8
_VMEM_LIMIT = 32 * 1024 * 1024    # scoped VMEM request; safe on v5e/v6e/v7x
_TILE_BUDGET = 6 * 1024 * 1024    # per-tile working-set budget (double-buffered)


def _round_up(x, m):
    return ((x + m - 1) // m) * m


def _pick_tile_n(n, row_bytes):
    """Largest row tile (multiple of 8, <=1024) whose double-buffered tiles fit budget."""
    if n <= _SUBLANE:
        return n
    cap = max(_SUBLANE, _TILE_BUDGET // max(1, 2 * row_bytes))
    t = min(n, 1024, cap)
    if t >= n:
        return n  # whole N fits: a single full-dim block is legal and cheapest
    return max(_SUBLANE, (t // _SUBLANE) * _SUBLANE)


def _pick_tile_f(f):
    """Largest lane-aligned tile that divides F (keeps F-edge blocks exact); else full F."""
    for cand in range(4096, _LANE - 1, -_LANE):
        if cand <= f and f % cand == 0:
            return cand
    return f  # TODO(synk): huge F with no 128-multiple divisor keeps a full-F block


def _aligned_window(f, lo, hi):
    """(block_w, block_idx, offset): a lane-aligned column window of width block_w
    (multiple of 128, or full F) whose block_idx-th block covers [lo, hi)."""
    k = hi - lo
    w = _round_up(max(k, 1), _LANE)
    while w < f:
        j0 = lo // w
        if j0 * w + w >= hi:
            return w, j0, lo - j0 * w
        w += _LANE
    return f, 0, lo


def _contiguous_slice_kernel(x_ref, o_ref, *, offset):
    # offset is a static Python int (self.min relative to the aligned window).
    k = o_ref.shape[-1]
    o_ref[...] = x_ref[:, offset:offset + k]


def _gather_matmul_kernel(x_ref, idx_ref, o_ref, acc_ref, *, tile_f, compute_dtype):
    fi = pl.program_id(1)

    @pl.when(fi == 0)
    def _init():
        acc_ref[...] = jnp.zeros_like(acc_ref)

    # Build the (TILE_F, K_pad) one-hot selection tile on the fly (cheap VPU
    # compares) instead of DMAing an (F, K) f32 matrix from HBM. Padding lanes
    # hold index -1 -> all-zero one-hot columns.
    rows = jax.lax.broadcasted_iota(jnp.int32, (tile_f, idx_ref.shape[-1]), 0)
    rows = rows + fi * tile_f
    onehot = (rows == idx_ref[...]).astype(compute_dtype)

    acc_ref[...] += jnp.dot(
        x_ref[...].astype(compute_dtype), onehot,
        preferred_element_type=jnp.float32)

    @pl.when(fi == pl.num_programs(1) - 1)
    def _done():
        o_ref[...] = acc_ref[...].astype(o_ref.dtype)


class ArrayFeatureExtractor:
    """JAX / Pallas port of hummingbird's ArrayFeatureExtractor."""

    def __init__(self, column_indices):
        ci = [int(c) for c in column_indices]
        # NOTE: mirrors upstream hummingbird — an unsorted-but-contiguous index
        # set is returned in sorted (slice) order, same as the torch module.
        self.is_contiguous = (max(ci) - min(ci) + 1) == len(ci)
        self.min = min(ci)
        self.max = max(ci) + 1
        self.k = len(ci)
        self.column_indices = jnp.asarray(ci, dtype=jnp.int32)
        # Padded (1, K_pad) index row, cached once (lane-dense MXU output width).
        self.k_pad = _round_up(self.k, _LANE)
        idx_pad = np.full((1, self.k_pad), -1, dtype=np.int32)
        idx_pad[0, : self.k] = np.asarray(ci, dtype=np.int32)
        self._idx_pad = jnp.asarray(idx_pad)

    def __call__(self, x):
        # TODO(synk): the `isinstance(x, tuple)` branch (`x[self.column_indices]`)
        # is Python tuple indexing, not a tensor op; no Pallas equivalent.
        if x.ndim == 1:
            x = x.reshape(1, -1)
        n, f = x.shape
        if self.is_contiguous:
            return self._contiguous(x, n, f)
        return self._gather(x, n, f)

    # ---- contiguous path: aligned-window DMA + static slice -----------------
    def _contiguous(self, x, n, f):
        k = self.max - self.min
        w, col_block, offset = _aligned_window(f, self.min, self.max)
        itemsize = jnp.dtype(x.dtype).itemsize
        tile_n = _pick_tile_n(n, (w + k) * itemsize)
        kernel = functools.partial(_contiguous_slice_kernel, offset=offset)
        return pl.pallas_call(
            kernel,
            out_shape=jax.ShapeDtypeStruct((n, k), x.dtype),
            grid_spec=pltpu.PrefetchScalarGridSpec(
                num_scalar_prefetch=0,
                grid=(pl.cdiv(n, tile_n),),
                # Only the 128-aligned column window containing [min, max) is
                # DMA'd per row tile (not all F columns).
                in_specs=[pl.BlockSpec((tile_n, w), lambda i: (i, col_block))],
                out_specs=pl.BlockSpec((tile_n, k), lambda i: (i, 0)),
            ),
            compiler_params=pltpu.CompilerParams(
                dimension_semantics=("parallel",),
                vmem_limit_bytes=_VMEM_LIMIT,
            ),
        )(x)

    # ---- non-contiguous path: in-kernel one-hot MXU gather -------------------
    def _gather(self, x, n, f):
        k, k_pad = self.k, self.k_pad
        if x.dtype == jnp.float32 or x.dtype == jnp.bfloat16:
            compute_dtype = x.dtype  # exact with 0/1 weights + f32 accumulation
        else:
            # TODO(synk): int/bool inputs routed through f32 (no int MXU on v7x);
            # exact for |values| < 2**24.
            compute_dtype = jnp.float32

        tile_f = _pick_tile_f(f)
        itemsize = jnp.dtype(x.dtype).itemsize
        row_bytes = tile_f * itemsize + k_pad * (itemsize + 4)  # x + out + f32 acc
        tile_n = _pick_tile_n(n, row_bytes)

        kernel = functools.partial(
            _gather_matmul_kernel, tile_f=tile_f, compute_dtype=compute_dtype)
        out_pad = pl.pallas_call(
            kernel,
            out_shape=jax.ShapeDtypeStruct((n, k_pad), x.dtype),
            grid_spec=pltpu.PrefetchScalarGridSpec(
                num_scalar_prefetch=0,
                grid=(pl.cdiv(n, tile_n), pl.cdiv(f, tile_f)),
                in_specs=[
                    pl.BlockSpec((tile_n, tile_f), lambda i, j: (i, j)),
                    # constant block index -> index row stays VMEM-resident
                    pl.BlockSpec((1, k_pad), lambda i, j: (0, 0)),
                ],
                # lane-dense (TILE_N, K_pad) output block; padding sliced off below
                out_specs=pl.BlockSpec((tile_n, k_pad), lambda i, j: (i, 0)),
                scratch_shapes=[pltpu.VMEM((tile_n, k_pad), jnp.float32)],
            ),
            compiler_params=pltpu.CompilerParams(
                dimension_semantics=("parallel", "arbitrary"),
                vmem_limit_bytes=_VMEM_LIMIT,
            ),
        )(x, self._idx_pad)
        return out_pad[:, :k]


if __name__ == "__main__":
    key = jax.random.PRNGKey(0)
    x = jax.random.normal(key, (2, 16), dtype=jnp.float32)

    # Non-contiguous column selection (SelectKBest-style).
    idx_noncontig = [3, 7, 1, 12]
    afe_nc = ArrayFeatureExtractor(idx_noncontig)
    out_nc = jax.block_until_ready(afe_nc(x))
    ref_nc = np.asarray(x)[:, idx_noncontig]
    assert out_nc.shape == (2, len(idx_noncontig))
    np.testing.assert_allclose(np.asarray(out_nc), ref_nc, rtol=0, atol=0)

    # Contiguous column selection (VarianceThreshold-style slice path).
    idx_contig = [4, 5, 6, 7]
    afe_c = ArrayFeatureExtractor(idx_contig)
    out_c = jax.block_until_ready(afe_c(x))
    assert out_c.shape == (2, len(idx_contig))
    np.testing.assert_allclose(np.asarray(out_c), np.asarray(x)[:, 4:8], rtol=0, atol=0)

    # 1-D input promotes to (1, F), like the torch .view(1, -1) branch.
    x1d = jax.random.normal(jax.random.PRNGKey(1), (16,), dtype=jnp.float32)
    out_1d = jax.block_until_ready(afe_nc(x1d))
    np.testing.assert_allclose(
        np.asarray(out_1d), np.asarray(x1d)[None, :][:, idx_noncontig])

    # Integer inputs stay exact through the f32 MXU routing and keep their dtype.
    xi = jax.random.randint(jax.random.PRNGKey(2), (2, 16), -100, 100, dtype=jnp.int32)
    out_i = jax.block_until_ready(afe_nc(xi))
    np.testing.assert_array_equal(np.asarray(out_i), np.asarray(xi)[:, idx_noncontig])
    assert out_i.dtype == jnp.int32

    # Larger shape: exercises N tiling (partial last row tile), the resident
    # index row, and the aligned column-window DMA.
    xl = jax.random.normal(jax.random.PRNGKey(3), (1040, 256), dtype=jnp.float32)
    idx_l = [7, 250, 33, 128, 64]
    out_l = jax.block_until_ready(ArrayFeatureExtractor(idx_l)(xl))
    np.testing.assert_allclose(np.asarray(out_l), np.asarray(xl)[:, idx_l], rtol=0, atol=0)

    idx_lc = list(range(100, 132))
    out_lc = jax.block_until_ready(ArrayFeatureExtractor(idx_lc)(xl))
    np.testing.assert_allclose(np.asarray(out_lc), np.asarray(xl)[:, 100:132], rtol=0, atol=0)

    print("KERNEL_OK")
</pallas_src>

<mosaic_0001>
module attributes {stable_mosaic.version = 11 : i64} {
  func.func @_gather_matmul_kernel(%arg0: i32, %arg1: i32, %arg2: memref<2x16xf32, #tpu.memory_space<vmem>>, %arg3: memref<1x128xi32, #tpu.memory_space<vmem>>, %arg4: memref<2x128xf32, #tpu.memory_space<vmem>>, %arg5: memref<2x128xf32, #tpu.memory_space<vmem>>) attributes {dimension_semantics = [#tpu.dimension_semantics<parallel>, #tpu.dimension_semantics<arbitrary>], iteration_bounds = array<i64: 1, 1>, scalar_prefetch = 0 : i64, scratch_operands = 1 : i64, tpu.core_type = #tpu.core_type<tc>, window_params = [{transform_indices = @transform_0, window_bounds = array<i64: 2, 16>}, {pipeline_mode = #tpu.pipeline_mode<synchronous>, transform_indices = @transform_1, window_bounds = array<i64: 1, 128>}, {transform_indices = @transform_2, window_bounds = array<i64: 2, 128>}]} {
    %c0_i32 = arith.constant 0 : i32
    %0 = arith.cmpi eq, %arg1, %c0_i32 : i32
    %1 = arith.extui %0 : i1 to i32
    %c0_i32_0 = arith.constant 0 : i32
    %2 = arith.cmpi ne, %1, %c0_i32_0 : i32
    scf.if %2 {
      %cst_10 = arith.constant 0.000000e+00 : f32
      %20 = vector.broadcast %cst_10 : f32 to vector<2x128xf32>
      %c0_11 = arith.constant 0 : index
      %c0_12 = arith.constant 0 : index
      %21 = vector.load %arg5[%c0_11, %c0_12] : memref<2x128xf32, #tpu.memory_space<vmem>>, vector<2x128xf32>
      tpu.vector_store %arg5[%c0_11, %c0_12], %20 {strides = array<i32>} : memref<2x128xf32, #tpu.memory_space<vmem>>, vector<2x128xf32>,
    } else {
    }
    %3 = tpu.iota {dimensions = array<i32: 0>} : vector<16x128xi32>
    %c16_i32 = arith.constant 16 : i32
    %4 = arith.muli %arg1, %c16_i32 : i32
    %5 = vector.broadcast %4 : i32 to vector<16x128xi32>
    %6 = arith.addi %3, %5 : vector<16x128xi32>
    %c0 = arith.constant 0 : index
    %c0_1 = arith.constant 0 : index
    %7 = vector.load %arg3[%c0, %c0_1] : memref<1x128xi32, #tpu.memory_space<vmem>>, vector<1x128xi32>
    %8 = vector.broadcast %7 : vector<1x128xi32> to vector<16x128xi32>
    %9 = arith.cmpi eq, %6, %8 : vector<16x128xi32>
    %10 = arith.extui %9 : vector<16x128xi1> to vector<16x128xi32>
    %11 = arith.sitofp %10 : vector<16x128xi32> to vector<16x128xf32>
    %c0_2 = arith.constant 0 : index
    %c0_3 = arith.constant 0 : index
    %12 = vector.load %arg5[%c0_2, %c0_3] : memref<2x128xf32, #tpu.memory_space<vmem>>, vector<2x128xf32>
    %c0_4 = arith.constant 0 : index
    %c0_5 = arith.constant 0 : index
    %13 = vector.load %arg2[%c0_4, %c0_5] : memref<2x16xf32, #tpu.memory_space<vmem>>, vector<2x16xf32>
    %cst = arith.constant dense<0.000000e+00> : vector<2x128xf32>
    %14 = tpu.matmul %13, %11, %cst {dimension_numbers = #tpu.dot_dimension_numbers<[1], [0], [0], [1], [0, 0, 1, 1], [], []>} : vector<2x16xf32>, vector<16x128xf32>, vector<2x128xf32> -> vector<2x128xf32>
    %15 = arith.addf %12, %14 : vector<2x128xf32>
    %c0_6 = arith.constant 0 : index
    %c0_7 = arith.constant 0 : index
    %16 = vector.load %arg5[%c0_6, %c0_7] : memref<2x128xf32, #tpu.memory_space<vmem>>, vector<2x128xf32>
    tpu.vector_store %arg5[%c0_6, %c0_7], %15 {strides = array<i32>} : memref<2x128xf32, #tpu.memory_space<vmem>>, vector<2x128xf32>,
    %c0_i32_8 = arith.constant 0 : i32
    %17 = arith.cmpi eq, %arg1, %c0_i32_8 : i32
    %18 = arith.extui %17 : i1 to i32
    %c0_i32_9 = arith.constant 0 : i32
    %19 = arith.cmpi ne, %18, %c0_i32_9 : i32
    scf.if %19 {
      %c0_10 = arith.constant 0 : index
      %c0_11 = arith.constant 0 : index
      %20 = vector.load %arg5[%c0_10, %c0_11] : memref<2x128xf32, #tpu.memory_space<vmem>>, vector<2x128xf32>
      %c0_12 = arith.constant 0 : index
      %c0_13 = arith.constant 0 : index
      %21 = vector.load %arg4[%c0_12, %c0_13] : memref<2x128xf32, #tpu.memory_space<vmem>>, vector<2x128xf32>
      tpu.vector_store %arg4[%c0_12, %c0_13], %20 {strides = array<i32>} : memref<2x128xf32, #tpu.memory_space<vmem>>, vector<2x128xf32>,
    } else {
    }
    return
  }
  func.func @transform_0(%arg0: i32, %arg1: i32) -> (i32, i32) {
    %c0_i32 = arith.constant 0 : i32
    return %arg0, %arg1 : i32, i32
  }
  func.func @transform_1(%arg0: i32, %arg1: i32) -> (i32, i32) {
    %c0_i32 = arith.constant 0 : i32
    %c0_i32_0 = arith.constant 0 : i32
    %c0_i32_1 = arith.constant 0 : i32
    return %c0_i32, %c0_i32_0 : i32, i32
  }
  func.func @transform_2(%arg0: i32, %arg1: i32) -> (i32, i32) {
    %c0_i32 = arith.constant 0 : i32
    %c0_i32_0 = arith.constant 0 : i32
    return %arg0, %c0_i32 : i32, i32
  }
}

</mosaic_0001>

<llo_original>
// kernel: tpu_custom_call.1
$region0: #{tpu_custom_call.1}
  #allocation0 [shape = 'u32[]', space=smem, size = 0x4, offset = 0x4, fixed_abs, tag = 'smem constant byte address 0x4 - core index']
  #allocation1 [shape = 'u32[144,128]{1,0:T(1,128)}', space=vmem, size = 0x12000, scoped, tag = 'internal scratch']
  #allocation2 [shape = 'f32[2,128]{1,0:T(2,128)}', space=vmem, size = 0x400, scoped, tag = 'scratch operand']
  %s0 = inlined_call_operand.hbm [shape: f32[2,16], index: 0, kind: input, shape index: {}]
  %s1 = inlined_call_operand.vmem [shape: s32[1,128], index: 1, kind: input, shape index: {}]
  %s2 = inlined_call_operand.hbm [shape: f32[2,128], index: 2, kind: output, shape index: {}]
  %s3 = sld [smem:[#allocation0]]
  $region30: #{tpu_custom_call.1} parent=0
    _
  %s5 = ssub.s32 1, %s3
  %s6 = scalar_select 0, %s5, %s3
  $region1: #{tpu_custom_call.1} parent=0
    #allocation3 [shape = 'u8[1024]{0}', space=vmem, size = 0x400, scoped, tag = 'input window, operand 0, single buffered']
    #allocation4 [shape = 's32[1]{0}', space=sflag, size = 0x4, scoped, tag = 'scoped memory for tpu_custom_call.1']
    #allocation5 [shape = 's32[1]{0}', space=sflag, size = 0x4, scoped, tag = 'scoped memory for tpu_custom_call.1']
    #allocation6 [shape = 'u8[1024]{0}', space=vmem, size = 0x400, scoped, tag = 'output window, operand 0, single buffered']
    %7 = vsyncpa [#allocation4], 0
    %8 = vsyncpa [#allocation5], 0
    // Predicated region
    $region2: #{tpu_custom_call.1} parent=1 // pred_check
      _
    $region3: #{tpu_custom_call.1} parent=1 // pred_check_branch
      %10 = sbr.rel (0) target = $region5
    $region4: #{tpu_custom_call.1} parent=1 // pred_region
      %s12 = ssub.s32 32, 32
      %13 = vsyncadd [#allocation4], %s12
      %s15 = sshll.u32 [#allocation3], 4
      %s16 = int_to_ptr.vmem [resolvable:$true] %s15
      %18 = dma.hbm_to_vmem [thread:$0]  %s0, 32, %s16, [#allocation4]
    $region5: #{tpu_custom_call.1} parent=1 // pred_fallthru
      _
    // Predicated region
    $region6: #{tpu_custom_call.1} parent=1 // pred_check
      _
    $region7: #{tpu_custom_call.1} parent=1 // pred_check_branch
      %20 = sbr.rel (0) target = $region9
    $region8: #{tpu_custom_call.1} parent=1 // pred_region
      _
    $region9: #{tpu_custom_call.1} parent=1 // pred_fallthru
      _
    // Predicated region
    $region10: #{tpu_custom_call.1} parent=1 // pred_check
      _
    $region11: #{tpu_custom_call.1} parent=1 // pred_check_branch
      %22 = sbr.rel (0) target = $region13
    $region12: #{tpu_custom_call.1} parent=1 // pred_region
      %23 = dma.done [#allocation4], 32
    $region13: #{tpu_custom_call.1} parent=1 // pred_fallthru
      _
    %p24 = scmp.eq.s32.totalorder 0, 0
    // Predicated region
    $region14: #{tpu_custom_call.1} parent=1 // pred_check
      %p25 = pneg %p24
    $region15: #{tpu_custom_call.1} parent=1 // pred_check_branch
      %27 = sbr.rel (%p25) target = $region17
    $region16: #{tpu_custom_call.1} parent=1 // pred_region
      %28 = vst [vmem:[#allocation2] sm:$0x3] 0.0
    $region17: #{tpu_custom_call.1} parent=1 // pred_fallthru
      _
    %v29 = vlaneseq
    %v30 = vshrl.u32 %v29, 7
    %v31 = vadd.s32 %v30, 8
    %s32 = smul.u32 0, 16
    %v33 = vstv %s32
    %v34 = vadd.s32 %v30, %v33
    %v35 = vadd.s32 %v31, %v33
    %v36 = vld [vmem:[%s1] sm:$0x1]
    %v37 = vlaneseq
    %v38 = vshrl.u32 %v37, 7
    %v39 = vsub.s32 0, %v38
    %v40 = vrot.slane %v36, %v39
    %vm41 = vcmp.eq.s32.totalorder %v34, %v40
    %vm42 = vcmp.eq.s32.totalorder %v35, %v40
    %v43 = vsel %vm41, 1, 0
    %v44 = vsel %vm42, 1, 0
    %v45 = vcvt.s32.f32 %v43
    %v46 = vcvt.s32.f32 %v44
    %v47 = vld [vmem:[#allocation2] sm:$0x3]
    %v48 = vld [vmem:[#allocation3] sm:$0x3]
    %vm49 = vcmask 130048
    %v51 = vsel %vm49, %v48, 0
    %53 = vmatprep.subr.mxu0 0.0
    %54 = vmatpush1.msra.mxu0 %v45
    %55 = vmatprep.subr.mxu0 0.0
    %56 = vmatpush1.msra.mxu0 %v46
    %57 = vmatprep.subr.mxu0 0.0
    %58 = vmatpush1.msra.mxu0 0.0
    %59 = vmatprep.subr.mxu0 0.0
    %60 = vmatpush1.msra.mxu0 0.0
    %61 = vmatprep.subr.mxu0 0.0
    %62 = vmatpush1.msra.mxu0 0.0
    %63 = vmatprep.subr.mxu0 0.0
    %64 = vmatpush1.msra.mxu0 0.0
    %65 = vmatprep.subr.mxu0 0.0
    %66 = vmatpush1.msra.mxu0 0.0
    %67 = vmatprep.subr.mxu0 0.0
    %68 = vmatpush1.msra.mxu0 0.0
    %69 = vmatprep.subr.mxu0 0.0
    %70 = vmatpush1.msra.mxu0 0.0
    %71 = vmatprep.subr.mxu0 0.0
    %72 = vmatpush1.msra.mxu0 0.0
    %73 = vmatprep.subr.mxu0 0.0
    %74 = vmatpush1.msra.mxu0 0.0
    %75 = vmatprep.subr.mxu0 0.0
    %76 = vmatpush1.msra.mxu0 0.0
    %77 = vmatprep.subr.mxu0 0.0
    %78 = vmatpush1.msra.mxu0 0.0
    %79 = vmatprep.subr.mxu0 0.0
    %80 = vmatpush1.msra.mxu0 0.0
    %81 = vmatprep.subr.mxu0 0.0
    %82 = vmatpush1.msra.mxu0 0.0
    %83 = vmatprep.subr.mxu0 0.0
    %84 = vmatpush1.msra.mxu0 0.0
    %85 = vmatprep.subr.mxu0 0.0
    %86 = vmatpush1.msra.mxu0 0.0
    %87 = vmatprep.subr.mxu0 0.0
    %88 = vmatpush1.msra.mxu0 0.0
    %89 = vmatprep.subr.mxu0 0.0
    %90 = vmatpush1.msra.mxu0 0.0
    %91 = vmatprep.subr.mxu0 0.0
    %92 = vmatpush1.msra.mxu0 0.0
    %93 = vmatprep.subr.mxu0 0.0
    %94 = vmatpush1.msra.mxu0 0.0
    %95 = vmatprep.subr.mxu0 0.0
    %96 = vmatpush1.msra.mxu0 0.0
    %97 = vmatprep.subr.mxu0 0.0
    %98 = vmatpush1.msra.mxu0 0.0
    %99 = vmatprep.subr.mxu0 0.0
    %100 = vmatpush1.msra.mxu0 0.0
    %101 = vmatprep.subr.mxu0 0.0
    %102 = vmatpush1.msra.mxu0 0.0
    %103 = vmatprep.subr.mxu0 0.0
    %104 = vmatpush1.msra.mxu0 0.0
    %105 = vmatprep.subr.mxu0 0.0
    %106 = vmatpush1.msra.mxu0 0.0
    %107 = vmatprep.subr.mxu0 0.0
    %108 = vmatpush1.msra.mxu0 0.0
    %109 = vmatprep.subr.mxu0 0.0
    %110 = vmatpush1.msra.mxu0 0.0
    %111 = vmatprep.subr.mxu0 0.0
    %112 = vmatpush1.msra.mxu0 0.0
    %113 = vmatprep.subr.mxu0 0.0
    %114 = vmatpush1.msra.mxu0 0.0
    %115 = vmatprep.subr.mxu0 0.0
    %116 = vmatpush1.msra.mxu0 0.0
    %117 = vmatprep.mubr.f32.mxu0 0.0
    %118 = vmatmul.mubr.f32.gmra.mrb[0].mxu0 %v51
    %v119 = vpop.f32.mrb[0].mxu0
    %v120 = vadd.f32 0.0, %v119
    %v121 = vpop.f32.mrb[0].mxu0
    %122 = vdwg.mxu0
    %v123 = vadd.f32 %v47, %v120
    %124 = vst [vmem:[#allocation2] sm:$0x3] %v123
    // Predicated region
    $region18: #{tpu_custom_call.1} parent=1 // pred_check
      %p125 = pneg %p24
    $region19: #{tpu_custom_call.1} parent=1 // pred_check_branch
      %127 = sbr.rel (%p125) target = $region21
    $region20: #{tpu_custom_call.1} parent=1 // pred_region
      %v128 = vld [vmem:[#allocation2] sm:$0x3]
      %129 = vst [vmem:[#allocation6] sm:$0x3] %v128
    $region21: #{tpu_custom_call.1} parent=1 // pred_fallthru
      _
    // Predicated region
    $region22: #{tpu_custom_call.1} parent=1 // pred_check
      _
    $region23: #{tpu_custom_call.1} parent=1 // pred_check_branch
      %131 = sbr.rel (0) target = $region25
    $region24: #{tpu_custom_call.1} parent=1 // pred_region
      %s133 = ssub.s32 32, 32
      %134 = vsyncadd [#allocation5], %s133
      %s136 = sshll.u32 [#allocation6], 4
      %s137 = int_to_ptr.vmem [resolvable:$true] %s136
      %139 = dma.vmem_to_hbm [thread:$0]  %s137, 32, %s2, [#allocation5]
    $region25: #{tpu_custom_call.1} parent=1 // pred_fallthru
      _
    // Predicated region
    $region26: #{tpu_custom_call.1} parent=1 // pred_check
      _
    $region27: #{tpu_custom_call.1} parent=1 // pred_check_branch
      %141 = sbr.rel (0) target = $region29
    $region28: #{tpu_custom_call.1} parent=1 // pred_region
      %142 = dma.done [#allocation5], 32
    $region29: #{tpu_custom_call.1} parent=1 // pred_fallthru
      _
    %143 = vsyncpa [#allocation4], 1
    %144 = vsyncpa [#allocation5], 1

</llo_original>
